<compile_context>
chip_gen: v6e
topology: v6e:2x2x1
jax: 0.10.0
libtpu: 0.0.40
codegen_flags: <defaults>
</compile_context>

<pallas_src>
import jax
import jax.numpy as jnp
from jax import lax
from jax.experimental import pallas as pl
from jax.experimental.pallas import tpu as pltpu


# Below this batch size, plain XLA wins over the kernel launch overhead.
_PALLAS_MIN_BATCH = 1024


def qnetwork_kernel(s_ref, a_ref, w1s_ref, w1a_ref, b1_ref, w2_ref, b2_ref,
                    w3_ref, b3_ref, out_ref):
    # Matmul input dtype (f32 or bf16) is carried by the pre-cast weights.
    compute_dtype = w1s_ref.dtype

    # ----- layer 1: Linear(state_dim + a_dim -> hidden) + ReLU --------------
    # State half on the MXU (K = state_dim), f32 accumulation.
    s = s_ref[...].astype(compute_dtype)                       # (TB, S)
    h1 = jnp.dot(s, w1s_ref[...], preferred_element_type=jnp.float32)
    h1 = h1 + b1_ref[...]                                      # (TB, H) f32

    # Action half: a_dim is tiny (e.g. 4); a K=4 MXU pass would load only a few
    # systolic rows yet pay the full push/pop, so do it as broadcast-FMAs on
    # the VPU (which has plenty of slack in this kernel).
    a = a_ref[...].astype(jnp.float32)                         # (TB, A)
    a_dim = a.shape[-1]
    if a_dim <= 16:
        w1a = w1a_ref[...]                                     # (A, H) f32
        for k in range(a_dim):                                 # static unroll
            h1 = h1 + a[:, k:k + 1] * w1a[k:k + 1, :]
    else:
        h1 = h1 + jnp.dot(a.astype(compute_dtype),
                          w1a_ref[...].astype(compute_dtype),
                          preferred_element_type=jnp.float32)
    h1 = jnp.maximum(h1, 0.0)

    # ----- layer 2: Linear(hidden -> hidden) + ReLU --------------------------
    h2 = jnp.dot(h1.astype(compute_dtype), w2_ref[...],
                 preferred_element_type=jnp.float32)
    h2 = jnp.maximum(h2 + b2_ref[...], 0.0)                    # (TB, H) f32

    # ----- layer 3: Linear(hidden -> 1) --------------------------------------
    # Contract w3 (1, H) against h2 (TB, H) on the hidden axis so the result
    # comes out lane-dense as (1, TB) (no N=1 matmul, no masked stores).
    q_row = lax.dot_general(
        w3_ref[...], h2,
        dimension_numbers=(((1,), (1,)), ((), ())),
        preferred_element_type=jnp.float32)                    # (1, TB)
    out_ref[...] = (q_row + b3_ref[0]).astype(out_ref.dtype)


def _qnetwork_jax(state, action, params):
    """Pure-JAX forward (reference + small-batch fast path)."""
    hi = jax.lax.Precision.HIGHEST
    x = jnp.concatenate([state, action], axis=-1)
    h1 = jnp.maximum(jnp.dot(x, params["w1"].T, precision=hi) + params["b1"], 0.0)
    h2 = jnp.maximum(jnp.dot(h1, params["w2"].T, precision=hi) + params["b2"], 0.0)
    return jnp.dot(h2, params["w3"].T, precision=hi) + params["b3"]


def _tpu_generation():
    try:
        kind = jax.devices()[0].device_kind.lower()
    except Exception:
        return None
    if "v7" in kind:
        return 7
    if "v6" in kind:
        return 6
    if "v5" in kind:
        return 5
    return None


def _round_up(x, m):
    return ((x + m - 1) // m) * m


def _tile_b_cap(gen):
    # Per-row VMEM cost (batch-major, 128-lane padded, double-buffered inputs
    # + f32 intermediates) is ~3-4 KB.  Caps keep the working set inside each
    # generation's scoped/physical VMEM budget.
    if gen == 5:
        return 2048          # 16 MiB default scoped VMEM on v5e
    if gen == 7:
        return 4096          # 64 MiB *physical* VMEM per TC on v7x
    if gen == 6:
        return 8192          # v6e: 128 MiB physical, raise the scoped limit
    return 2048              # unknown: conservative


def _vmem_limit_bytes(gen):
    if gen == 5:
        return 32 * 1024 * 1024
    if gen == 7:
        return 48 * 1024 * 1024   # stay under 64 MiB physical per TC
    if gen == 6:
        return 64 * 1024 * 1024
    return None


def _tile_b_heuristic(B, gen):
    cap = _tile_b_cap(gen)
    if B <= 256:
        return min(B, cap)
    # >= 2 balanced lane-dense tiles so the "parallel" grid axis shards across
    # both v7x TensorCores, bounded by the per-generation VMEM-derived cap.
    return min(cap, _round_up(pl.cdiv(B, 2), 128))


def qnetwork_forward(state, action, params, *, tile_b=None, use_bf16=False,
                     force_pallas=False):
    """state: (B, state_dim) f32, action: (B, a_dim) f32.

    params holds PyTorch-convention weights:
      w1: (hidden, state_dim + a_dim), b1: (hidden,)
      w2: (hidden, hidden),            b2: (hidden,)
      w3: (1, hidden),                 b3: (1,)
    Returns (B, 1) float32, matching QNetwork.forward (layer_norm=False).
    """
    # TODO(synk): layer_norm=True variant (nn.LayerNorm after each hidden
    # Linear) is not implemented in this fused kernel.
    B, state_dim = state.shape
    Ba, a_dim = action.shape
    assert B == Ba, (B, Ba)
    hidden = params["w1"].shape[0]

    use_kernel = force_pallas or (tile_b is not None) or (B >= _PALLAS_MIN_BATCH)
    if not use_kernel:
        # Small batches: the custom-call launch + a single under-filled grid
        # step cannot be amortized; plain XLA wins here.
        return _qnetwork_jax(state, action, params)

    compute_dtype = jnp.bfloat16 if use_bf16 else jnp.float32

    # Glue: split + pre-transpose PyTorch-layout weights to (in, out); cast the
    # MXU weights to the compute dtype.  w1a / biases / w3 stay f32 (they feed
    # the VPU / f32 accumulation).
    w1 = params["w1"]
    w1s = w1[:, :state_dim].T.astype(compute_dtype)       # (state_dim, hidden)
    w1a = w1[:, state_dim:].T.astype(jnp.float32)         # (a_dim, hidden)
    b1 = params["b1"].reshape(1, hidden).astype(jnp.float32)
    w2 = params["w2"].T.astype(compute_dtype)             # (hidden, hidden)
    b2 = params["b2"].reshape(1, hidden).astype(jnp.float32)
    w3 = params["w3"].reshape(1, hidden).astype(jnp.float32)
    b3 = params["b3"].reshape(1).astype(jnp.float32)      # SMEM scalar

    # Stream the activations in the compute dtype: for bf16 this halves the
    # dominant HBM/DMA traffic (the kernel is memory/overhead bound).
    s_in = state.astype(compute_dtype)
    a_in = action.astype(compute_dtype)

    gen = _tpu_generation()
    if tile_b is None:
        tile_b = _tile_b_heuristic(B, gen)
    tile_b = min(tile_b, B)
    grid = (pl.cdiv(B, tile_b),)

    act_item = jnp.dtype(compute_dtype).itemsize
    cost = pl.CostEstimate(
        flops=2 * B * ((state_dim + a_dim) * hidden + hidden * hidden + hidden),
        transcendentals=0,
        bytes_accessed=(B * (state_dim + a_dim) * act_item   # activations in
                        + B * 4                               # q out
                        + (state_dim + a_dim) * hidden * 4    # w1
                        + hidden * hidden * 4 + hidden * 8 + 8))

    cp_kwargs = dict(dimension_semantics=("parallel",))
    vmem_limit = _vmem_limit_bytes(gen)
    if vmem_limit is not None:
        cp_kwargs["vmem_limit_bytes"] = vmem_limit

    out_row = pl.pallas_call(
        qnetwork_kernel,
        out_shape=jax.ShapeDtypeStruct((1, B), jnp.float32),
        grid_spec=pltpu.PrefetchScalarGridSpec(
            num_scalar_prefetch=0,
            grid=grid,
            in_specs=[
                pl.BlockSpec((tile_b, state_dim), lambda i: (i, 0)),   # state
                pl.BlockSpec((tile_b, a_dim),     lambda i: (i, 0)),   # action
                pl.BlockSpec((state_dim, hidden), lambda i: (0, 0)),   # w1s
                pl.BlockSpec((a_dim, hidden),     lambda i: (0, 0)),   # w1a
                pl.BlockSpec((1, hidden),         lambda i: (0, 0)),   # b1
                pl.BlockSpec((hidden, hidden),    lambda i: (0, 0)),   # w2
                pl.BlockSpec((1, hidden),         lambda i: (0, 0)),   # b2
                pl.BlockSpec((1, hidden),         lambda i: (0, 0)),   # w3
                pl.BlockSpec(memory_space=pltpu.MemorySpace.SMEM),     # b3
            ],
            # Lane-dense output: batch on the lane axis, one (1, tile_b) block
            # per grid step.
            out_specs=pl.BlockSpec((1, tile_b), lambda i: (0, i)),
        ),
        compiler_params=pltpu.CompilerParams(**cp_kwargs),
        cost_estimate=cost,
    )(s_in, a_in, w1s, w1a, b1, w2, b2, w3, b3)

    # (1, B) row-major == (B, 1) row-major: reshape is layout plumbing only.
    return out_row.reshape(B, 1)


def init_qnetwork_params(key, state_dim, a_dim, hidden_dim):
    """Deterministic init mimicking nn.Linear defaults: U(-1/sqrt(fan_in), +)."""
    k1, k2, k3, k4, k5, k6 = jax.random.split(key, 6)

    def lin_init(kw, kb, fan_in, fan_out):
        bound = 1.0 / jnp.sqrt(jnp.float32(fan_in))
        w = jax.random.uniform(kw, (fan_out, fan_in), jnp.float32,
                               minval=-bound, maxval=bound)
        b = jax.random.uniform(kb, (fan_out,), jnp.float32,
                               minval=-bound, maxval=bound)
        return w, b

    w1, b1 = lin_init(k1, k2, state_dim + a_dim, hidden_dim)
    w2, b2 = lin_init(k3, k4, hidden_dim, hidden_dim)
    w3, b3 = lin_init(k5, k6, hidden_dim, 1)
    return {"w1": w1, "b1": b1, "w2": w2, "b2": b2, "w3": w3, "b3": b3}


if __name__ == "__main__":
    key = jax.random.PRNGKey(0)
    k_param, k_s, k_a, k_s2, k_a2 = jax.random.split(key, 5)

    batch = 8
    state_dim = 16
    a_dim = 4
    hidden_dim = 32

    params = init_qnetwork_params(k_param, state_dim, a_dim, hidden_dim)

    # --- small batch: force the Pallas path so the kernel itself is exercised.
    state = jax.random.normal(k_s, (batch, state_dim), jnp.float32)
    action = jax.random.normal(k_a, (batch, a_dim), jnp.float32)
    ref = _qnetwork_jax(state, action, params)

    out = jax.block_until_ready(
        qnetwork_forward(state, action, params, force_pallas=True))
    assert out.shape == (batch, 1), out.shape
    assert jnp.allclose(out, ref, atol=1e-4, rtol=1e-4), (
        "f32 kernel mismatch vs JAX reference")

    # bf16 streaming path (f32 accumulation): relaxed tolerance.
    out_bf16 = jax.block_until_ready(
        qnetwork_forward(state, action, params, use_bf16=True,
                         force_pallas=True))
    assert out_bf16.shape == (batch, 1), out_bf16.shape
    assert jnp.allclose(out_bf16, ref, atol=5e-2, rtol=5e-2), (
        "bf16 kernel mismatch vs JAX reference")

    # --- larger batch: auto heuristic -> >= 2 lane-dense grid steps.
    big_b = 2048
    state_big = jax.random.normal(k_s2, (big_b, state_dim), jnp.float32)
    action_big = jax.random.normal(k_a2, (big_b, a_dim), jnp.float32)
    ref_big = _qnetwork_jax(state_big, action_big, params)

    out_big = jax.block_until_ready(
        qnetwork_forward(state_big, action_big, params))
    assert out_big.shape == (big_b, 1), out_big.shape
    assert jnp.allclose(out_big, ref_big, atol=1e-3, rtol=1e-3), (
        "large-batch kernel mismatch vs JAX reference")

    print("KERNEL_OK")
</pallas_src>

<mosaic_0001>
module attributes {stable_mosaic.version = 11 : i64} {
  func.func @qnetwork_kernel(%arg0: i32, %arg1: memref<8x16xf32, #tpu.memory_space<vmem>>, %arg2: memref<8x4xf32, #tpu.memory_space<vmem>>, %arg3: memref<16x32xf32, #tpu.memory_space<vmem>>, %arg4: memref<4x32xf32, #tpu.memory_space<vmem>>, %arg5: memref<1x32xf32, #tpu.memory_space<vmem>>, %arg6: memref<32x32xf32, #tpu.memory_space<vmem>>, %arg7: memref<1x32xf32, #tpu.memory_space<vmem>>, %arg8: memref<1x32xf32, #tpu.memory_space<vmem>>, %arg9: memref<1xf32, #tpu.memory_space<smem>>, %arg10: memref<1x8xf32, #tpu.memory_space<vmem>>) attributes {dimension_semantics = [#tpu.dimension_semantics<parallel>], iteration_bounds = array<i64: 1>, scalar_prefetch = 0 : i64, scratch_operands = 0 : i64, tpu.core_type = #tpu.core_type<tc>, window_params = [{transform_indices = @transform_0, window_bounds = array<i64: 8, 16>}, {transform_indices = @transform_1, window_bounds = array<i64: 8, 4>}, {pipeline_mode = #tpu.pipeline_mode<synchronous>, transform_indices = @transform_2, window_bounds = array<i64: 16, 32>}, {pipeline_mode = #tpu.pipeline_mode<synchronous>, transform_indices = @transform_3, window_bounds = array<i64: 4, 32>}, {pipeline_mode = #tpu.pipeline_mode<synchronous>, transform_indices = @transform_4, window_bounds = array<i64: 1, 32>}, {pipeline_mode = #tpu.pipeline_mode<synchronous>, transform_indices = @transform_5, window_bounds = array<i64: 32, 32>}, {pipeline_mode = #tpu.pipeline_mode<synchronous>, transform_indices = @transform_6, window_bounds = array<i64: 1, 32>}, {pipeline_mode = #tpu.pipeline_mode<synchronous>, transform_indices = @transform_7, window_bounds = array<i64: 1, 32>}, {transform_indices = @transform_8, window_bounds = array<i64: 1>}, {transform_indices = @transform_9, window_bounds = array<i64: 1, 8>}]} {
    %c0 = arith.constant 0 : index
    %c0_0 = arith.constant 0 : index
    %0 = vector.load %arg1[%c0, %c0_0] : memref<8x16xf32, #tpu.memory_space<vmem>>, vector<8x16xf32>
    %c0_1 = arith.constant 0 : index
    %c0_2 = arith.constant 0 : index
    %1 = vector.load %arg3[%c0_1, %c0_2] : memref<16x32xf32, #tpu.memory_space<vmem>>, vector<16x32xf32>
    %cst = arith.constant dense<0.000000e+00> : vector<8x32xf32>
    %2 = tpu.matmul %0, %1, %cst {dimension_numbers = #tpu.dot_dimension_numbers<[1], [0], [0], [1], [0, 0, 1, 1], [], []>} : vector<8x16xf32>, vector<16x32xf32>, vector<8x32xf32> -> vector<8x32xf32>
    %c0_3 = arith.constant 0 : index
    %c0_4 = arith.constant 0 : index
    %3 = vector.load %arg5[%c0_3, %c0_4] : memref<1x32xf32, #tpu.memory_space<vmem>>, vector<1x32xf32>
    %4 = vector.broadcast %3 : vector<1x32xf32> to vector<8x32xf32>
    %5 = arith.addf %2, %4 : vector<8x32xf32>
    %c0_5 = arith.constant 0 : index
    %c0_6 = arith.constant 0 : index
    %6 = vector.load %arg2[%c0_5, %c0_6] : memref<8x4xf32, #tpu.memory_space<vmem>>, vector<8x4xf32>
    %c0_7 = arith.constant 0 : index
    %c0_8 = arith.constant 0 : index
    %7 = vector.load %arg4[%c0_7, %c0_8] : memref<4x32xf32, #tpu.memory_space<vmem>>, vector<4x32xf32>
    %8 = vector.extract_strided_slice %6 {offsets = [0, 0], sizes = [8, 1], strides = [1, 1]} : vector<8x4xf32> to vector<8x1xf32>
    %9 = vector.extract_strided_slice %7 {offsets = [0, 0], sizes = [1, 32], strides = [1, 1]} : vector<4x32xf32> to vector<1x32xf32>
    %10 = vector.broadcast %8 : vector<8x1xf32> to vector<8x32xf32>
    %11 = vector.broadcast %9 : vector<1x32xf32> to vector<8x32xf32>
    %12 = arith.mulf %10, %11 : vector<8x32xf32>
    %13 = arith.addf %5, %12 : vector<8x32xf32>
    %14 = vector.extract_strided_slice %6 {offsets = [0, 1], sizes = [8, 1], strides = [1, 1]} : vector<8x4xf32> to vector<8x1xf32>
    %15 = vector.extract_strided_slice %7 {offsets = [1, 0], sizes = [1, 32], strides = [1, 1]} : vector<4x32xf32> to vector<1x32xf32>
    %16 = vector.broadcast %14 : vector<8x1xf32> to vector<8x32xf32>
    %17 = vector.broadcast %15 : vector<1x32xf32> to vector<8x32xf32>
    %18 = arith.mulf %16, %17 : vector<8x32xf32>
    %19 = arith.addf %13, %18 : vector<8x32xf32>
    %20 = vector.extract_strided_slice %6 {offsets = [0, 2], sizes = [8, 1], strides = [1, 1]} : vector<8x4xf32> to vector<8x1xf32>
    %21 = vector.extract_strided_slice %7 {offsets = [2, 0], sizes = [1, 32], strides = [1, 1]} : vector<4x32xf32> to vector<1x32xf32>
    %22 = vector.broadcast %20 : vector<8x1xf32> to vector<8x32xf32>
    %23 = vector.broadcast %21 : vector<1x32xf32> to vector<8x32xf32>
    %24 = arith.mulf %22, %23 : vector<8x32xf32>
    %25 = arith.addf %19, %24 : vector<8x32xf32>
    %26 = vector.extract_strided_slice %6 {offsets = [0, 3], sizes = [8, 1], strides = [1, 1]} : vector<8x4xf32> to vector<8x1xf32>
    %27 = vector.extract_strided_slice %7 {offsets = [3, 0], sizes = [1, 32], strides = [1, 1]} : vector<4x32xf32> to vector<1x32xf32>
    %28 = vector.broadcast %26 : vector<8x1xf32> to vector<8x32xf32>
    %29 = vector.broadcast %27 : vector<1x32xf32> to vector<8x32xf32>
    %30 = arith.mulf %28, %29 : vector<8x32xf32>
    %31 = arith.addf %25, %30 : vector<8x32xf32>
    %cst_9 = arith.constant 0.000000e+00 : f32
    %32 = vector.broadcast %cst_9 : f32 to vector<8x32xf32>
    %33 = arith.maximumf %31, %32 : vector<8x32xf32>
    %c0_10 = arith.constant 0 : index
    %c0_11 = arith.constant 0 : index
    %34 = vector.load %arg6[%c0_10, %c0_11] : memref<32x32xf32, #tpu.memory_space<vmem>>, vector<32x32xf32>
    %cst_12 = arith.constant dense<0.000000e+00> : vector<8x32xf32>
    %35 = tpu.matmul %33, %34, %cst_12 {dimension_numbers = #tpu.dot_dimension_numbers<[1], [0], [0], [1], [0, 0, 1, 1], [], []>} : vector<8x32xf32>, vector<32x32xf32>, vector<8x32xf32> -> vector<8x32xf32>
    %c0_13 = arith.constant 0 : index
    %c0_14 = arith.constant 0 : index
    %36 = vector.load %arg7[%c0_13, %c0_14] : memref<1x32xf32, #tpu.memory_space<vmem>>, vector<1x32xf32>
    %37 = vector.broadcast %36 : vector<1x32xf32> to vector<8x32xf32>
    %38 = arith.addf %35, %37 : vector<8x32xf32>
    %cst_15 = arith.constant 0.000000e+00 : f32
    %39 = vector.broadcast %cst_15 : f32 to vector<8x32xf32>
    %40 = arith.maximumf %38, %39 : vector<8x32xf32>
    %c0_16 = arith.constant 0 : index
    %c0_17 = arith.constant 0 : index
    %41 = vector.load %arg8[%c0_16, %c0_17] : memref<1x32xf32, #tpu.memory_space<vmem>>, vector<1x32xf32>
    %cst_18 = arith.constant dense<0.000000e+00> : vector<1x8xf32>
    %42 = tpu.matmul %41, %40, %cst_18 {dimension_numbers = #tpu.dot_dimension_numbers<[1], [1], [0], [0], [0, 0, 1, 0], [], []>} : vector<1x32xf32>, vector<8x32xf32>, vector<1x8xf32> -> vector<1x8xf32>
    %c0_19 = arith.constant 0 : index
    %43 = memref.load %arg9[%c0_19] : memref<1xf32, #tpu.memory_space<smem>>
    %44 = vector.broadcast %43 : f32 to vector<1x8xf32>
    %45 = arith.addf %42, %44 : vector<1x8xf32>
    %c0_20 = arith.constant 0 : index
    %c0_21 = arith.constant 0 : index
    %46 = vector.load %arg10[%c0_20, %c0_21] : memref<1x8xf32, #tpu.memory_space<vmem>>, vector<1x8xf32>
    tpu.vector_store %arg10[%c0_20, %c0_21], %45 {strides = array<i32>} : memref<1x8xf32, #tpu.memory_space<vmem>>, vector<1x8xf32>,
    return
  }
  func.func @transform_0(%arg0: i32) -> (i32, i32) {
    %c0_i32 = arith.constant 0 : i32
    %c0_i32_0 = arith.constant 0 : i32
    return %arg0, %c0_i32 : i32, i32
  }
  func.func @transform_1(%arg0: i32) -> (i32, i32) {
    %c0_i32 = arith.constant 0 : i32
    %c0_i32_0 = arith.constant 0 : i32
    return %arg0, %c0_i32 : i32, i32
  }
  func.func @transform_2(%arg0: i32) -> (i32, i32) {
    %c0_i32 = arith.constant 0 : i32
    %c0_i32_0 = arith.constant 0 : i32
    %c0_i32_1 = arith.constant 0 : i32
    return %c0_i32, %c0_i32_0 : i32, i32
  }
  func.func @transform_3(%arg0: i32) -> (i32, i32) {
    %c0_i32 = arith.constant 0 : i32
    %c0_i32_0 = arith.constant 0 : i32
    %c0_i32_1 = arith.constant 0 : i32
    return %c0_i32, %c0_i32_0 : i32, i32
  }
  func.func @transform_4(%arg0: i32) -> (i32, i32) {
    %c0_i32 = arith.constant 0 : i32
    %c0_i32_0 = arith.constant 0 : i32
    %c0_i32_1 = arith.constant 0 : i32
    return %c0_i32, %c0_i32_0 : i32, i32
  }
  func.func @transform_5(%arg0: i32) -> (i32, i32) {
    %c0_i32 = arith.constant 0 : i32
    %c0_i32_0 = arith.constant 0 : i32
    %c0_i32_1 = arith.constant 0 : i32
    return %c0_i32, %c0_i32_0 : i32, i32
  }
  func.func @transform_6(%arg0: i32) -> (i32, i32) {
    %c0_i32 = arith.constant 0 : i32
    %c0_i32_0 = arith.constant 0 : i32
    %c0_i32_1 = arith.constant 0 : i32
    return %c0_i32, %c0_i32_0 : i32, i32
  }
  func.func @transform_7(%arg0: i32) -> (i32, i32) {
    %c0_i32 = arith.constant 0 : i32
    %c0_i32_0 = arith.constant 0 : i32
    %c0_i32_1 = arith.constant 0 : i32
    return %c0_i32, %c0_i32_0 : i32, i32
  }
  func.func @transform_8(%arg0: i32) -> i32 {
    %c0_i32 = arith.constant 0 : i32
    %c0_i32_0 = arith.constant 0 : i32
    return %c0_i32 : i32
  }
  func.func @transform_9(%arg0: i32) -> (i32, i32) {
    %c0_i32 = arith.constant 0 : i32
    %c0_i32_0 = arith.constant 0 : i32
    return %c0_i32, %arg0 : i32, i32
  }
}

</mosaic_0001>

<llo_original>
// kernel: tpu_custom_call.1
$region0: #{tpu_custom_call.1}
  #allocation0 [shape = 'u32[]', space=smem, size = 0x4, offset = 0x4, fixed_abs, tag = 'smem constant byte address 0x4 - core index']
  #allocation1 [shape = 'u32[144,128]{1,0:T(1,128)}', space=vmem, size = 0x12000, scoped, tag = 'internal scratch']
  #allocation2 [shape = 'f32[1]{0:T(128)S(6)}', space=smem, size = 0x200, scoped, tag = 'scoped memory for tpu_custom_call.1']
  %s0 = inlined_call_operand.hbm [shape: f32[8,16], index: 0, kind: input, shape index: {}]
  %s1 = inlined_call_operand.vmem [shape: f32[8,4], index: 1, kind: input, shape index: {}]
  %s2 = inlined_call_operand.vmem [shape: f32[16,32], index: 2, kind: input, shape index: {}]
  %s3 = inlined_call_operand.hbm [shape: f32[4,32], index: 3, kind: input, shape index: {}]
  %s4 = inlined_call_operand.vmem [shape: f32[1,32], index: 4, kind: input, shape index: {}]
  %s5 = inlined_call_operand.hbm [shape: f32[32,32], index: 5, kind: input, shape index: {}]
  %s6 = inlined_call_operand.vmem [shape: f32[1,32], index: 6, kind: input, shape index: {}]
  %s7 = inlined_call_operand.vmem [shape: f32[1,32], index: 7, kind: input, shape index: {}]
  %s8 = inlined_call_operand.<no memory space> [shape: f32[1], index: 8, kind: input, shape index: {}]
  %s9 = inlined_call_operand.hbm [shape: f32[1,8], index: 9, kind: output, shape index: {}]
  %s10 = sld [smem:[#allocation0]]
  $region58: #{tpu_custom_call.1} parent=0
    _
  %s12 = ssub.s32 1, %s10
  %s13 = scalar_select 0, %s12, %s10
  %14 = sst [smem:[#allocation2]] %s8
  $region1: #{tpu_custom_call.1} parent=0
    #allocation3 [shape = 'u8[4096]{0}', space=vmem, size = 0x1000, scoped, tag = 'input window, operand 0, single buffered']
    #allocation4 [shape = 's32[1]{0}', space=sflag, size = 0x4, scoped, tag = 'scoped memory for tpu_custom_call.1']
    #allocation5 [shape = 's32[1]{0}', space=sflag, size = 0x4, scoped, tag = 'scoped memory for tpu_custom_call.1']
    #allocation6 [shape = 'u8[2048]{0}', space=vmem, size = 0x800, scoped, tag = 'input window, operand 3, single buffered']
    #allocation7 [shape = 's32[1]{0}', space=sflag, size = 0x4, scoped, tag = 'scoped memory for tpu_custom_call.1']
    #allocation8 [shape = 'u8[16384]{0}', space=vmem, size = 0x4000, scoped, tag = 'input window, operand 5, single buffered']
    #allocation9 [shape = 'u8[512]{0}', space=vmem, size = 0x400, scoped, tag = 'output window, operand 0, single buffered']
    %15 = vsyncpa [#allocation4], 0
    %16 = vsyncpa [#allocation7], 0
    %17 = vsyncpa [#allocation5], 0
    // Predicated region
    $region2: #{tpu_custom_call.1} parent=1 // pred_check
      _
    $region3: #{tpu_custom_call.1} parent=1 // pred_check_branch
      %19 = sbr.rel (0) target = $region5
    $region4: #{tpu_custom_call.1} parent=1 // pred_region
      %s21 = ssub.s32 128, 128
      %22 = vsyncadd [#allocation4], %s21
      %s24 = sshll.u32 [#allocation3], 4
      %s25 = int_to_ptr.vmem [resolvable:$true] %s24
      %27 = dma.hbm_to_vmem [thread:$0]  %s0, 128, %s25, [#allocation4]
    $region5: #{tpu_custom_call.1} parent=1 // pred_fallthru
      _
    // Predicated region
    $region6: #{tpu_custom_call.1} parent=1 // pred_check
      _
    $region7: #{tpu_custom_call.1} parent=1 // pred_check_branch
      %29 = sbr.rel (0) target = $region9
    $region8: #{tpu_custom_call.1} parent=1 // pred_region
      _
    $region9: #{tpu_custom_call.1} parent=1 // pred_fallthru
      _
    // Predicated region
    $region10: #{tpu_custom_call.1} parent=1 // pred_check
      _
    $region11: #{tpu_custom_call.1} parent=1 // pred_check_branch
      %31 = sbr.rel (0) target = $region13
    $region12: #{tpu_custom_call.1} parent=1 // pred_region
      _
    $region13: #{tpu_custom_call.1} parent=1 // pred_fallthru
      _
    // Predicated region
    $region14: #{tpu_custom_call.1} parent=1 // pred_check
      _
    $region15: #{tpu_custom_call.1} parent=1 // pred_check_branch
      %33 = sbr.rel (0) target = $region17
    $region16: #{tpu_custom_call.1} parent=1 // pred_region
      %s35 = ssub.s32 64, 64
      %36 = vsyncadd [#allocation7], %s35
      %s38 = sshll.u32 [#allocation6], 4
      %s39 = int_to_ptr.vmem [resolvable:$true] %s38
      %41 = dma.hbm_to_vmem [thread:$0]  %s3, 64, %s39, [#allocation7]
    $region17: #{tpu_custom_call.1} parent=1 // pred_fallthru
      _
    // Predicated region
    $region18: #{tpu_custom_call.1} parent=1 // pred_check
      _
    $region19: #{tpu_custom_call.1} parent=1 // pred_check_branch
      %43 = sbr.rel (0) target = $region21
    $region20: #{tpu_custom_call.1} parent=1 // pred_region
      _
    $region21: #{tpu_custom_call.1} parent=1 // pred_fallthru
      _
    // Predicated region
    $region22: #{tpu_custom_call.1} parent=1 // pred_check
      _
    $region23: #{tpu_custom_call.1} parent=1 // pred_check_branch
      %45 = sbr.rel (0) target = $region25
    $region24: #{tpu_custom_call.1} parent=1 // pred_region
      %s47 = ssub.s32 512, 512
      %48 = vsyncadd [#allocation7], %s47
      %s49 = sshll.u32 [#allocation8], 4
      %s50 = int_to_ptr.vmem [resolvable:$true] %s49
      %55 = dma.hbm_to_vmem [thread:$0]  %s5, 512, %s50, [#allocation7], 128, 128, 8
    $region25: #{tpu_custom_call.1} parent=1 // pred_fallthru
      _
    // Predicated region
    $region26: #{tpu_custom_call.1} parent=1 // pred_check
      _
    $region27: #{tpu_custom_call.1} parent=1 // pred_check_branch
      %57 = sbr.rel (0) target = $region29
    $region28: #{tpu_custom_call.1} parent=1 // pred_region
      _
    $region29: #{tpu_custom_call.1} parent=1 // pred_fallthru
      _
    // Predicated region
    $region30: #{tpu_custom_call.1} parent=1 // pred_check
      _
    $region31: #{tpu_custom_call.1} parent=1 // pred_check_branch
      %59 = sbr.rel (0) target = $region33
    $region32: #{tpu_custom_call.1} parent=1 // pred_region
      _
    $region33: #{tpu_custom_call.1} parent=1 // pred_fallthru
      _
    // Predicated region
    $region34: #{tpu_custom_call.1} parent=1 // pred_check
      _
    $region35: #{tpu_custom_call.1} parent=1 // pred_check_branch
      %61 = sbr.rel (0) target = $region37
    $region36: #{tpu_custom_call.1} parent=1 // pred_region
      _
    $region37: #{tpu_custom_call.1} parent=1 // pred_fallthru
      _
    // Predicated region
    $region38: #{tpu_custom_call.1} parent=1 // pred_check
      _
    $region39: #{tpu_custom_call.1} parent=1 // pred_check_branch
      %63 = sbr.rel (0) target = $region41
    $region40: #{tpu_custom_call.1} parent=1 // pred_region
      %64 = dma.done [#allocation4], 128
    $region41: #{tpu_custom_call.1} parent=1 // pred_fallthru
      _
    // Predicated region
    $region42: #{tpu_custom_call.1} parent=1 // pred_check
      _
    $region43: #{tpu_custom_call.1} parent=1 // pred_check_branch
      %66 = sbr.rel (0) target = $region45
    $region44: #{tpu_custom_call.1} parent=1 // pred_region
      %67 = dma.done [#allocation7], 64
    $region45: #{tpu_custom_call.1} parent=1 // pred_fallthru
      _
    // Predicated region
    $region46: #{tpu_custom_call.1} parent=1 // pred_check
      _
    $region47: #{tpu_custom_call.1} parent=1 // pred_check_branch
      %69 = sbr.rel (0) target = $region49
    $region48: #{tpu_custom_call.1} parent=1 // pred_region
      %70 = dma.done [#allocation7], 512
    $region49: #{tpu_custom_call.1} parent=1 // pred_fallthru
      _
    %v71 = vld [vmem:[#allocation3] sm:$0xff]
    %v72 = vld [vmem:[%s2] sm:$0xff]
    %v73 = vld [vmem:[%s2 + $0x8] sm:$0xff]
    %v74 = vld [vmem:[%s4] sm:$0x1]
    %v76 = vlaneseq
    %v77 = vshrl.u32 %v76, 7
    %v78 = vsub.s32 0, %v77
    %v79 = vrot.slane %v74, %v78
    %vm81 = vcmask 130048
    %v83 = vsel %vm81, %v71, 0
    %85 = vmatprep.subr.mxu0 0.0
    %86 = vmatpush1.msra.mxu0 0.0
    %87 = vmatprep.subr.mxu0 0.0
    %88 = vmatpush1.msra.mxu0 0.0
    %89 = vmatprep.subr.mxu0 0.0
    %90 = vmatpush1.msra.mxu0 0.0
    %91 = vmatprep.subr.mxu0 0.0
    %92 = vmatpush1.msra.mxu0 0.0
    %93 = vmatprep.subr.mxu0 0.0
    %94 = vmatpush1.msra.mxu0 0.0
    %95 = vmatprep.subr.mxu0 0.0
    %96 = vmatpush1.msra.mxu0 0.0
    %97 = vmatprep.subr.mxu0 0.0
    %98 = vmatpush1.msra.mxu0 0.0
    %99 = vmatprep.subr.mxu0 0.0
    %100 = vmatpush1.msra.mxu0 0.0
    %101 = vmatprep.subr.mxu0 0.0
    %102 = vmatpush1.msra.mxu0 0.0
    %103 = vmatprep.subr.mxu0 0.0
    %104 = vmatpush1.msra.mxu0 0.0
    %105 = vmatprep.subr.mxu0 0.0
    %106 = vmatpush1.msra.mxu0 0.0
    %107 = vmatprep.subr.mxu0 0.0
    %108 = vmatpush1.msra.mxu0 0.0
    %109 = vmatprep.subr.mxu0 0.0
    %110 = vmatpush1.msra.mxu0 0.0
    %111 = vmatprep.subr.mxu0 0.0
    %112 = vmatpush1.msra.mxu0 0.0
    %113 = vmatprep.subr.mxu0 0.0
    %114 = vmatpush1.msra.mxu0 %v73
    %115 = vmatprep.subr.mxu0 0.0
    %116 = vmatpush1.msra.mxu0 %v72
    %117 = vmatprep.subr.mxu0 0.0
    %118 = vmatpush2.msra.mxu0 0.0
    %119 = vmatprep.subr.mxu0 0.0
    %120 = vmatpush2.msra.mxu0 0.0
    %121 = vmatprep.subr.mxu0 0.0
    %122 = vmatpush2.msra.mxu0 0.0
    %123 = vmatprep.subr.mxu0 0.0
    %124 = vmatpush2.msra.mxu0 0.0
    %125 = vmatprep.subr.mxu0 0.0
    %126 = vmatpush2.msra.mxu0 0.0
    %127 = vmatprep.subr.mxu0 0.0
    %128 = vmatpush2.msra.mxu0 0.0
    %129 = vmatprep.subr.mxu0 0.0
    %130 = vmatpush2.msra.mxu0 0.0
    %131 = vmatprep.subr.mxu0 0.0
    %132 = vmatpush2.msra.mxu0 0.0
    %133 = vmatprep.subr.mxu0 0.0
    %134 = vmatpush2.msra.mxu0 0.0
    %135 = vmatprep.subr.mxu0 0.0
    %136 = vmatpush2.msra.mxu0 0.0
    %137 = vmatprep.subr.mxu0 0.0
    %138 = vmatpush2.msra.mxu0 0.0
    %139 = vmatprep.subr.mxu0 0.0
    %140 = vmatpush2.msra.mxu0 0.0
    %141 = vmatprep.subr.mxu0 0.0
    %142 = vmatpush2.msra.mxu0 0.0
    %143 = vmatprep.subr.mxu0 0.0
    %144 = vmatpush2.msra.mxu0 0.0
    %145 = vmatprep.subr.mxu0 0.0
    %146 = vmatpush2.msra.mxu0 0.0
    %147 = vmatprep.subr.mxu0 0.0
    %148 = vmatpush2.msra.mxu0 0.0
    %149 = vmatprep.mubr.f32.mxu0 0.0
    %150 = vmatmul.mubr.f32.gmra.mxu0 %v83
    %v151 = vpop.f32.mrf.mxu0
    %v152 = vadd.f32 %v79, %v151
    %v153 = vpop.f32.mrf.mxu0
    %154 = vdwg.mxu0
    %v155 = vld [vmem:[%s1] sm:$0xff]
    %v156 = vld [vmem:[#allocation6] sm:$0xf]
    %158 = vset.pattern.permute.xlu0 0
    %159 = vperm.xlu0 %158, %v155
    %v160 = vpop.permute.xlu0 %159
    %v162 = vlaneseq
    %v163 = vshrl.u32 %v162, 7
    %v164 = vsub.s32 0, %v163
    %v165 = vrot.slane %v156, %v164
    %v166 = vmul.f32 %v160, %v165
    %v167 = vadd.f32 %v152, %v166
    %168 = vset.pattern.permute.xlu0 1
    %169 = vperm.xlu0 %168, %v155
    %v170 = vpop.permute.xlu0 %169
    %v172 = vlaneseq
    %v173 = vshrl.u32 %v172, 7
    %v174 = vsub.s32 1, %v173
    %v175 = vrot.slane %v156, %v174
    %v176 = vmul.f32 %v170, %v175
    %v177 = vadd.f32 %v167, %v176
    %178 = vset.pattern.permute.xlu0 2
    %179 = vperm.xlu0 %178, %v155
    %v180 = vpop.permute.xlu0 %179
    %v182 = vlaneseq
    %v183 = vshrl.u32 %v182, 7
    %v184 = vsub.s32 2, %v183
    %v185 = vrot.slane %v156, %v184
    %v186 = vmul.f32 %v180, %v185
    %v187 = vadd.f32 %v177, %v186
    %188 = vset.pattern.permute.xlu0 3
    %189 = vperm.xlu0 %188, %v155
    %v190 = vpop.permute.xlu0 %189
    %v192 = vlaneseq
    %v193 = vshrl.u32 %v192, 7
    %v194 = vsub.s32 3, %v193
    %v195 = vrot.slane %v156, %v194
    %v196 = vmul.f32 %v190, %v195
    %v197 = vadd.f32 %v187, %v196
    %v198 = vmax.f32 %v197, 0.0
    %v199 = vld [vmem:[#allocation8] sm:$0xff]
    %v200 = vld [vmem:[#allocation8 + $0x8] sm:$0xff]
    %v201 = vld [vmem:[#allocation8 + $0x10] sm:$0xff]
    %v202 = vld [vmem:[#allocation8 + $0x18] sm:$0xff]
    %v203 = vld [vmem:[%s6] sm:$0x1]
    %v205 = vlaneseq
    %v206 = vshrl.u32 %v205, 7
    %v207 = vsub.s32 0, %v206
    %v208 = vrot.slane %v203, %v207
    %vm210 = vcmask 261120
    %v212 = vsel %vm210, %v198, 0
    %214 = vmatprep.subr.mxu0 0.0
    %215 = vmatpush1.msra.mxu0 0.0
    %216 = vmatprep.subr.mxu0 0.0
    %217 = vmatpush1.msra.mxu0 0.0
    %218 = vmatprep.subr.mxu0 0.0
    %219 = vmatpush1.msra.mxu0 0.0
    %220 = vmatprep.subr.mxu0 0.0
    %221 = vmatpush1.msra.mxu0 0.0
    %222 = vmatprep.subr.mxu0 0.0
    %223 = vmatpush1.msra.mxu0 0.0
    %224 = vmatprep.subr.mxu0 0.0
    %225 = vmatpush1.msra.mxu0 0.0
    %226 = vmatprep.subr.mxu0 0.0
    %227 = vmatpush1.msra.mxu0 0.0
    %228 = vmatprep.subr.mxu0 0.0
    %229 = vmatpush1.msra.mxu0 0.0
    %230 = vmatprep.subr.mxu0 0.0
    %231 = vmatpush1.msra.mxu0 0.0
    %232 = vmatprep.subr.mxu0 0.0
    %233 = vmatpush1.msra.mxu0 0.0
    %234 = vmatprep.subr.mxu0 0.0
    %235 = vmatpush1.msra.mxu0 0.0
    %236 = vmatprep.subr.mxu0 0.0
    %237 = vmatpush1.msra.mxu0 0.0
    %238 = vmatprep.subr.mxu0 0.0
    %239 = vmatpush1.msra.mxu0 %v202
    %240 = vmatprep.subr.mxu0 0.0
    %241 = vmatpush1.msra.mxu0 %v201
    %242 = vmatprep.subr.mxu0 0.0
    %243 = vmatpush1.msra.mxu0 %v200
    %244 = vmatprep.subr.mxu0 0.0
    %245 = vmatpush1.msra.mxu0 %v199
    %246 = vmatprep.subr.mxu0 0.0
    %247 = vmatpush2.msra.mxu0 0.0
    %248 = vmatprep.subr.mxu0 0.0
    %249 = vmatpush2.msra.mxu0 0.0
    %250 = vmatprep.subr.mxu0 0.0
    %251 = vmatpush2.msra.mxu0 0.0
    %252 = vmatprep.subr.mxu0 0.0
    %253 = vmatpush2.msra.mxu0 0.0
    %254 = vmatprep.subr.mxu0 0.0
    %255 = vmatpush2.msra.mxu0 0.0
    %256 = vmatprep.subr.mxu0 0.0
    %257 = vmatpush2.msra.mxu0 0.0
    %258 = vmatprep.subr.mxu0 0.0
    %259 = vmatpush2.msra.mxu0 0.0
    %260 = vmatprep.subr.mxu0 0.0
    %261 = vmatpush2.msra.mxu0 0.0
    %262 = vmatprep.subr.mxu0 0.0
    %263 = vmatpush2.msra.mxu0 0.0
    %264 = vmatprep.subr.mxu0 0.0
    %265 = vmatpush2.msra.mxu0 0.0
    %266 = vmatprep.subr.mxu0 0.0
    %267 = vmatpush2.msra.mxu0 0.0
    %268 = vmatprep.subr.mxu0 0.0
    %269 = vmatpush2.msra.mxu0 0.0
    %270 = vmatprep.subr.mxu0 0.0
    %271 = vmatpush2.msra.mxu0 0.0
    %272 = vmatprep.subr.mxu0 0.0
    %273 = vmatpush2.msra.mxu0 0.0
    %274 = vmatprep.subr.mxu0 0.0
    %275 = vmatpush2.msra.mxu0 0.0
    %276 = vmatprep.subr.mxu0 0.0
    %277 = vmatpush2.msra.mxu0 0.0
    %278 = vmatprep.mubr.f32.mxu0 0.0
    %279 = vmatmul.mubr.f32.gmra.mxu0 %v212
    %v280 = vpop.f32.mrf.mxu0
    %v281 = vadd.f32 %v208, %v280
    %v282 = vpop.f32.mrf.mxu0
    %283 = vdwg.mxu0
    %v284 = vmax.f32 %v281, 0.0
    %v285 = vld [vmem:[%s7] sm:$0x1]
    %s286 = sld [smem:[#allocation2]]
    %v287 = vstv %s286
    %v289 = vsel %vm210, %v285, 0
    %v292 = vsel %vm210, %v284, 0
    %294 = vmatprep.subr.mxu0 0.0
    %295 = vmatpush1.xpose.msra.mxu0 0.0
    %296 = vmatprep.subr.mxu0 0.0
    %297 = vmatpush1.xpose.msra.mxu0 0.0
    %298 = vmatprep.subr.mxu0 0.0
    %299 = vmatpush1.xpose.msra.mxu0 0.0
    %300 = vmatprep.subr.mxu0 0.0
    %301 = vmatpush1.xpose.msra.mxu0 0.0
    %302 = vmatprep.subr.mxu0 0.0
    %303 = vmatpush1.xpose.msra.mxu0 0.0
    %304 = vmatprep.subr.mxu0 0.0
    %305 = vmatpush1.xpose.msra.mxu0 0.0
    %306 = vmatprep.subr.mxu0 0.0
    %307 = vmatpush1.xpose.msra.mxu0 0.0
    %308 = vmatprep.subr.mxu0 0.0
    %309 = vmatpush1.xpose.msra.mxu0 0.0
    %310 = vmatprep.subr.mxu0 0.0
    %311 = vmatpush1.xpose.msra.mxu0 0.0
    %312 = vmatprep.subr.mxu0 0.0
    %313 = vmatpush1.xpose.msra.mxu0 0.0
    %314 = vmatprep.subr.mxu0 0.0
    %315 = vmatpush1.xpose.msra.mxu0 0.0
    %316 = vmatprep.subr.mxu0 0.0
    %317 = vmatpush1.xpose.msra.mxu0 0.0
    %318 = vmatprep.subr.mxu0 0.0
    %319 = vmatpush1.xpose.msra.mxu0 0.0
    %320 = vmatprep.subr.mxu0 0.0
    %321 = vmatpush1.xpose.msra.mxu0 0.0
    %322 = vmatprep.subr.mxu0 0.0
    %323 = vmatpush1.xpose.msra.mxu0 0.0
    %324 = vmatprep.subr.mxu0 0.0
    %325 = vmatpush1.xpose.msra.mxu0 %v292
    %326 = vmatprep.subr.mxu0 0.0
    %327 = vmatpush2.xpose.msra.mxu0 0.0
    %328 = vmatprep.subr.mxu0 0.0
    %329 = vmatpush2.xpose.msra.mxu0 0.0
    %330 = vmatprep.subr.mxu0 0.0
    %331 = vmatpush2.xpose.msra.mxu0 0.0
    %332 = vmatprep.subr.mxu0 0.0
    %333 = vmatpush2.xpose.msra.mxu0 0.0
    %334 = vmatprep.subr.mxu0 0.0
    %335 = vmatpush2.xpose.msra.mxu0 0.0
    %336 = vmatprep.subr.mxu0 0.0
    %337 = vmatpush2.xpose.msra.mxu0 0.0
    %338 = vmatprep.subr.mxu0 0.0
    %339 = vmatpush2.xpose.msra.mxu0 0.0
    %340 = vmatprep.subr.mxu0 0.0
    %341 = vmatpush2.xpose.msra.mxu0 0.0
    %342 = vmatprep.subr.mxu0 0.0
    %343 = vmatpush2.xpose.msra.mxu0 0.0
    %344 = vmatprep.subr.mxu0 0.0
    %345 = vmatpush2.xpose.msra.mxu0 0.0
    %346 = vmatprep.subr.mxu0 0.0
    %347 = vmatpush2.xpose.msra.mxu0 0.0
    %348 = vmatprep.subr.mxu0 0.0
    %349 = vmatpush2.xpose.msra.mxu0 0.0
    %350 = vmatprep.subr.mxu0 0.0
    %351 = vmatpush2.xpose.msra.mxu0 0.0
    %352 = vmatprep.subr.mxu0 0.0
    %353 = vmatpush2.xpose.msra.mxu0 0.0
    %354 = vmatprep.subr.mxu0 0.0
    %355 = vmatpush2.xpose.msra.mxu0 0.0
    %356 = vmatprep.subr.mxu0 0.0
    %357 = vmatpush2.xpose.msra.mxu0 0.0
    %358 = vmatprep.mubr.f32.mxu0 0.0
    %359 = vmatmul.mubr.f32.gmra.mxu0 %v289
    %v360 = vpop.f32.mrf.mxu0
    %v361 = vadd.f32 %v287, %v360
    %v362 = vpop.f32.mrf.mxu0
    %363 = vdwg.mxu0
    %vm364 = vcmask 57344
    %365 = vst.msk [vmem:[#allocation9] sm:$0x1] %vm364, %v361
    // Predicated region
    $region50: #{tpu_custom_call.1} parent=1 // pred_check
      _
    $region51: #{tpu_custom_call.1} parent=1 // pred_check_branch
      %367 = sbr.rel (0) target = $region53
    $region52: #{tpu_custom_call.1} parent=1 // pred_region
      %s369 = ssub.s32 16, 16
      %370 = vsyncadd [#allocation5], %s369
      %s372 = sshll.u32 [#allocation9], 4
      %s373 = int_to_ptr.vmem [resolvable:$true] %s372
      %375 = dma.vmem_to_hbm [thread:$0]  %s373, 16, %s9, [#allocation5]
    $region53: #{tpu_custom_call.1} parent=1 // pred_fallthru
      _
    // Predicated region
    $region54: #{tpu_custom_call.1} parent=1 // pred_check
      _
    $region55: #{tpu_custom_call.1} parent=1 // pred_check_branch
      %377 = sbr.rel (0) target = $region57
    $region56: #{tpu_custom_call.1} parent=1 // pred_region
      %378 = dma.done [#allocation5], 16
    $region57: #{tpu_custom_call.1} parent=1 // pred_fallthru
      _
    %379 = vsyncpa [#allocation4], 1
    %380 = vsyncpa [#allocation7], 1
    %381 = vsyncpa [#allocation5], 1

</llo_original>
